<compile_context>
chip_gen: v6e
topology: v6e:2x2x1
jax: 0.10.0
libtpu: 0.0.40
codegen_flags: <defaults>
</compile_context>

<pallas_src>
import jax
import jax.numpy as jnp
from jax.experimental import pallas as pl
from jax.experimental.pallas import tpu as pltpu

EPS = 1e-6


def _round_up(n, m):
    return ((n + m - 1) // m) * m


def sublayer_connection_kernel(x_ref, a_ref, b_ref, w_ref, wb_ref, o_ref):
    """Fused LayerNorm + Linear sublayer + residual for one (tm, D) row tile.

    x_ref : (tm, D)  input rows (promoted to f32 inside)
    a_ref : (1, D)   LayerNorm scale (torch `a`, init ones), f32
    b_ref : (1, D)   LayerNorm bias  (torch `b`, init zeros), f32
    w_ref : (D, D)   sublayer Linear weight, already cast to the MXU dtype (bf16)
    wb_ref: (1, D)   sublayer Linear bias, f32
    o_ref : (tm, D)  output rows
    """
    x = x_ref[...].astype(jnp.float32)
    d = x.shape[-1]

    # LayerNorm exactly as the PyTorch reference:
    #   mean over last dim; std with Bessel's correction (torch.Tensor.std default);
    #   b + a * (x - mean) / (std + eps)
    mean = jnp.mean(x, axis=-1, keepdims=True)
    diff = x - mean
    var_unbiased = jnp.sum(diff * diff, axis=-1, keepdims=True) * (1.0 / (d - 1))
    std = jnp.sqrt(var_unbiased)
    # Reciprocal goes to the EUP slot instead of occupying VALU divide slots.
    inv = pl.reciprocal(std + EPS, approx=False)
    normed = b_ref[...] + a_ref[...] * (diff * inv)

    # Sublayer Linear on the MXU: low-precision operands, f32 accumulation.
    y = jnp.dot(normed.astype(w_ref.dtype), w_ref[...],
                preferred_element_type=jnp.float32) + wb_ref[...]

    # Dropout (eval mode -> identity) + residual connection.
    o_ref[...] = (x + y).astype(o_ref.dtype)


def _build_call(M, D, tm, out_dtype, single_buffer_weight):
    # The weight's block index never changes; request single buffering so the
    # D x D weight is not double-buffered in VMEM (matters most on 64 MiB v7x).
    w_kwargs = {"pipeline_mode": pl.Buffered(1)} if single_buffer_weight else {}
    grid = (pl.cdiv(M, tm),)
    return pl.pallas_call(
        sublayer_connection_kernel,
        out_shape=jax.ShapeDtypeStruct((M, D), out_dtype),
        grid_spec=pltpu.PrefetchScalarGridSpec(
            num_scalar_prefetch=0,
            grid=grid,
            in_specs=[
                pl.BlockSpec((tm, D), lambda i: (i, 0)),             # x row tile
                pl.BlockSpec((1, D), lambda i: (0, 0)),              # LayerNorm a
                pl.BlockSpec((1, D), lambda i: (0, 0)),              # LayerNorm b
                pl.BlockSpec((D, D), lambda i: (0, 0), **w_kwargs),  # Linear weight (const)
                pl.BlockSpec((1, D), lambda i: (0, 0)),              # Linear bias
            ],
            out_specs=pl.BlockSpec((tm, D), lambda i: (i, 0)),
        ),
        compiler_params=pltpu.CompilerParams(
            dimension_semantics=("parallel",),   # shard row tiles across TensorCores
            vmem_limit_bytes=64 * 1024 * 1024,   # fits v7x; raises v5e's 16 MiB default
        ),
    )


def sublayer_connection(x, ln_a, ln_b, w, w_bias, *, tm=256,
                        matmul_dtype=jnp.bfloat16):
    """x: (..., D) float. Returns same shape/dtype as x.

    tm: requested row tile (rounded up to a multiple of 8, clamped near M).
    matmul_dtype: dtype of the MXU operands (bf16 by default; accumulation is f32).
    """
    orig_shape = x.shape
    D = orig_shape[-1]
    x2 = x.reshape(-1, D)
    M = x2.shape[0]

    # Row tile: multiple of 8 (sublane), never much larger than M.
    tm = _round_up(max(1, min(tm, M)), 8)

    ln_a2 = ln_a.reshape(1, D).astype(jnp.float32)
    ln_b2 = ln_b.reshape(1, D).astype(jnp.float32)
    wb2 = w_bias.reshape(1, D).astype(jnp.float32)
    w_mx = w.astype(matmul_dtype)   # cast once in HBM: halves weight DMA + VMEM

    args = (x2, ln_a2, ln_b2, w_mx, wb2)
    try:
        out = _build_call(M, D, tm, x.dtype, single_buffer_weight=True)(*args)
    except Exception:
        # pipeline_mode=pl.Buffered(1) not supported by this Pallas build; fall back
        # to default double buffering (identical results, 2x weight VMEM).
        out = _build_call(M, D, tm, x.dtype, single_buffer_weight=False)(*args)
    return out.reshape(orig_shape)


def reference_f32(x, ln_a, ln_b, w, w_bias):
    """Pure-JAX f32 reference mirroring the PyTorch forward (eval-mode dropout)."""
    d = x.shape[-1]
    mean = jnp.mean(x, axis=-1, keepdims=True)
    diff = x - mean
    std = jnp.sqrt(jnp.sum(diff * diff, axis=-1, keepdims=True) / (d - 1))
    normed = ln_b + ln_a * diff / (std + EPS)
    return x + (normed @ w + w_bias)


def reference_mxu(x, ln_a, ln_b, w, w_bias, matmul_dtype=jnp.bfloat16):
    """Reference mirroring the kernel's bf16-operand / f32-accumulate matmul."""
    d = x.shape[-1]
    mean = jnp.mean(x, axis=-1, keepdims=True)
    diff = x - mean
    std = jnp.sqrt(jnp.sum(diff * diff, axis=-1, keepdims=True) / (d - 1))
    normed = ln_b + ln_a * diff / (std + EPS)
    y = jnp.dot(normed.astype(matmul_dtype), w.astype(matmul_dtype),
                preferred_element_type=jnp.float32) + w_bias
    return x + y


if __name__ == "__main__":
    # Small but lane-dense shapes: hidden is a multiple of 128.
    batch, seq, hidden = 2, 8, 128   # M = 16 rows, D = 128

    key = jax.random.PRNGKey(0)
    kx, kw, kb = jax.random.split(key, 3)

    x = jax.random.normal(kx, (batch, seq, hidden), dtype=jnp.float32)

    # LayerNorm params as in __init__: ones / zeros.
    ln_a = jnp.ones((hidden,), dtype=jnp.float32)
    ln_b = jnp.zeros((hidden,), dtype=jnp.float32)

    # Deterministic sublayer (Linear hidden->hidden) parameters.
    w = jax.random.normal(kw, (hidden, hidden), dtype=jnp.float32) * 0.05
    w_bias = jax.random.normal(kb, (hidden,), dtype=jnp.float32) * 0.01

    out = sublayer_connection(x, ln_a, ln_b, w, w_bias)
    out = jax.block_until_ready(out)

    assert out.shape == x.shape and out.dtype == x.dtype

    ref_b = reference_mxu(x, ln_a, ln_b, w, w_bias)   # same bf16 matmul path
    ref_f = reference_f32(x, ln_a, ln_b, w, w_bias)   # pure f32 PyTorch-equivalent
    err_b = float(jnp.max(jnp.abs(out - ref_b)))
    err_f = float(jnp.max(jnp.abs(out - ref_f)))
    assert err_b < 5e-3, f"vs bf16-matmul reference: max err {err_b}"
    assert err_f < 5e-2, f"vs f32 reference: max err {err_f}"
    print("KERNEL_OK")
</pallas_src>

<mosaic_0001>
module attributes {stable_mosaic.version = 11 : i64} {
  func.func @sublayer_connection_kernel(%arg0: i32, %arg1: memref<16x128xf32, #tpu.memory_space<vmem>>, %arg2: memref<1x128xf32, #tpu.memory_space<vmem>>, %arg3: memref<1x128xf32, #tpu.memory_space<vmem>>, %arg4: memref<128x128xbf16, #tpu.memory_space<vmem>>, %arg5: memref<1x128xf32, #tpu.memory_space<vmem>>, %arg6: memref<16x128xf32, #tpu.memory_space<vmem>>) attributes {dimension_semantics = [#tpu.dimension_semantics<parallel>], iteration_bounds = array<i64: 1>, scalar_prefetch = 0 : i64, scratch_operands = 0 : i64, tpu.core_type = #tpu.core_type<tc>, window_params = [{transform_indices = @transform_0, window_bounds = array<i64: 16, 128>}, {pipeline_mode = #tpu.pipeline_mode<synchronous>, transform_indices = @transform_1, window_bounds = array<i64: 1, 128>}, {pipeline_mode = #tpu.pipeline_mode<synchronous>, transform_indices = @transform_2, window_bounds = array<i64: 1, 128>}, {pipeline_mode = #tpu.pipeline_mode<synchronous>, transform_indices = @transform_3, window_bounds = array<i64: 128, 128>}, {pipeline_mode = #tpu.pipeline_mode<synchronous>, transform_indices = @transform_4, window_bounds = array<i64: 1, 128>}, {transform_indices = @transform_5, window_bounds = array<i64: 16, 128>}]} {
    %c0 = arith.constant 0 : index
    %c0_0 = arith.constant 0 : index
    %0 = vector.load %arg1[%c0, %c0_0] : memref<16x128xf32, #tpu.memory_space<vmem>>, vector<16x128xf32>
    %cst = arith.constant dense<0.000000e+00> : vector<16xf32>
    %1 = vector.multi_reduction <add>, %0, %cst [1] : vector<16x128xf32> to vector<16xf32>
    %2 = vector.shape_cast %1 : vector<16xf32> to vector<16x1xf32>
    %cst_1 = arith.constant 1.280000e+02 : f32
    %3 = vector.broadcast %cst_1 : f32 to vector<16x1xf32>
    %4 = arith.divf %2, %3 : vector<16x1xf32>
    %5 = vector.broadcast %4 : vector<16x1xf32> to vector<16x128xf32>
    %6 = arith.subf %0, %5 : vector<16x128xf32>
    %7 = arith.mulf %6, %6 : vector<16x128xf32>
    %cst_2 = arith.constant dense<0.000000e+00> : vector<16xf32>
    %8 = vector.multi_reduction <add>, %7, %cst_2 [1] : vector<16x128xf32> to vector<16xf32>
    %9 = vector.shape_cast %8 : vector<16xf32> to vector<16x1xf32>
    %cst_3 = arith.constant 0.00787401571 : f32
    %10 = vector.broadcast %cst_3 : f32 to vector<16x1xf32>
    %11 = arith.mulf %9, %10 : vector<16x1xf32>
    %12 = math.sqrt %11 : vector<16x1xf32>
    %cst_4 = arith.constant 9.99999997E-7 : f32
    %13 = vector.broadcast %cst_4 : f32 to vector<16x1xf32>
    %14 = arith.addf %12, %13 : vector<16x1xf32>
    %15 = tpu.reciprocal %14 : vector<16x1xf32> -> vector<16x1xf32>
    %c0_5 = arith.constant 0 : index
    %c0_6 = arith.constant 0 : index
    %16 = vector.load %arg3[%c0_5, %c0_6] : memref<1x128xf32, #tpu.memory_space<vmem>>, vector<1x128xf32>
    %c0_7 = arith.constant 0 : index
    %c0_8 = arith.constant 0 : index
    %17 = vector.load %arg2[%c0_7, %c0_8] : memref<1x128xf32, #tpu.memory_space<vmem>>, vector<1x128xf32>
    %18 = vector.broadcast %15 : vector<16x1xf32> to vector<16x128xf32>
    %19 = arith.mulf %6, %18 : vector<16x128xf32>
    %20 = vector.broadcast %17 : vector<1x128xf32> to vector<16x128xf32>
    %21 = arith.mulf %20, %19 : vector<16x128xf32>
    %22 = vector.broadcast %16 : vector<1x128xf32> to vector<16x128xf32>
    %23 = arith.addf %22, %21 : vector<16x128xf32>
    %24 = arith.truncf %23 : vector<16x128xf32> to vector<16x128xbf16>
    %c0_9 = arith.constant 0 : index
    %c0_10 = arith.constant 0 : index
    %25 = vector.load %arg4[%c0_9, %c0_10] : memref<128x128xbf16, #tpu.memory_space<vmem>>, vector<128x128xbf16>
    %cst_11 = arith.constant dense<0.000000e+00> : vector<16x128xf32>
    %26 = tpu.matmul %24, %25, %cst_11 {dimension_numbers = #tpu.dot_dimension_numbers<[1], [0], [0], [1], [0, 0, 1, 1], [], []>} : vector<16x128xbf16>, vector<128x128xbf16>, vector<16x128xf32> -> vector<16x128xf32>
    %c0_12 = arith.constant 0 : index
    %c0_13 = arith.constant 0 : index
    %27 = vector.load %arg5[%c0_12, %c0_13] : memref<1x128xf32, #tpu.memory_space<vmem>>, vector<1x128xf32>
    %28 = vector.broadcast %27 : vector<1x128xf32> to vector<16x128xf32>
    %29 = arith.addf %26, %28 : vector<16x128xf32>
    %30 = arith.addf %0, %29 : vector<16x128xf32>
    %c0_14 = arith.constant 0 : index
    %c0_15 = arith.constant 0 : index
    %31 = vector.load %arg6[%c0_14, %c0_15] : memref<16x128xf32, #tpu.memory_space<vmem>>, vector<16x128xf32>
    tpu.vector_store %arg6[%c0_14, %c0_15], %30 {strides = array<i32>} : memref<16x128xf32, #tpu.memory_space<vmem>>, vector<16x128xf32>,
    return
  }
  func.func @transform_0(%arg0: i32) -> (i32, i32) {
    %c0_i32 = arith.constant 0 : i32
    %c0_i32_0 = arith.constant 0 : i32
    return %arg0, %c0_i32 : i32, i32
  }
  func.func @transform_1(%arg0: i32) -> (i32, i32) {
    %c0_i32 = arith.constant 0 : i32
    %c0_i32_0 = arith.constant 0 : i32
    %c0_i32_1 = arith.constant 0 : i32
    return %c0_i32, %c0_i32_0 : i32, i32
  }
  func.func @transform_2(%arg0: i32) -> (i32, i32) {
    %c0_i32 = arith.constant 0 : i32
    %c0_i32_0 = arith.constant 0 : i32
    %c0_i32_1 = arith.constant 0 : i32
    return %c0_i32, %c0_i32_0 : i32, i32
  }
  func.func @transform_3(%arg0: i32) -> (i32, i32) {
    %c0_i32 = arith.constant 0 : i32
    %c0_i32_0 = arith.constant 0 : i32
    %c0_i32_1 = arith.constant 0 : i32
    return %c0_i32, %c0_i32_0 : i32, i32
  }
  func.func @transform_4(%arg0: i32) -> (i32, i32) {
    %c0_i32 = arith.constant 0 : i32
    %c0_i32_0 = arith.constant 0 : i32
    %c0_i32_1 = arith.constant 0 : i32
    return %c0_i32, %c0_i32_0 : i32, i32
  }
  func.func @transform_5(%arg0: i32) -> (i32, i32) {
    %c0_i32 = arith.constant 0 : i32
    %c0_i32_0 = arith.constant 0 : i32
    return %arg0, %c0_i32 : i32, i32
  }
}

module attributes {stable_mosaic.version = 11 : i64} {
  func.func @sublayer_connection_kernel(%arg0: i32, %arg1: memref<16x128xf32, #tpu.memory_space<vmem>>, %arg2: memref<1x128xf32, #tpu.memory_space<vmem>>, %arg3: memref<1x128xf32, #tpu.memory_space<vmem>>, %arg4: memref<128x128xbf16, #tpu.memory_space<vmem>>, %arg5: memref<1x128xf32, #tpu.memory_space<vmem>>, %arg6: memref<16x128xf32, #tpu.memory_space<vmem>>) attributes {dimension_semantics = [#tpu.dimension_semantics<parallel>], iteration_bounds = array<i64: 1>, scalar_prefetch = 0 : i64, scratch_operands = 0 : i64, tpu.core_type = #tpu.core_type<tc>, window_params = [{transform_indices = @transform_0, window_bounds = array<i64: 16, 128>}, {pipeline_mode = #tpu.pipeline_mode<synchronous>, transform_indices = @transform_1, window_bounds = array<i64: 1, 128>}, {pipeline_mode = #tpu.pipeline_mode<synchronous>, transform_indices = @transform_2, window_bounds = array<i64: 1, 128>}, {pipeline_mode = #tpu.pipeline_mode<synchronous>, transform_indices = @transform_3, window_bounds = array<i64: 128, 128>}, {pipeline_mode = #tpu.pipeline_mode<synchronous>, transform_indices = @transform_4, window_bounds = array<i64: 1, 128>}, {transform_indices = @transform_5, window_bounds = array<i64: 16, 128>}]} {
    %c0 = arith.constant 0 : index
    %c0_0 = arith.constant 0 : index
    %0 = vector.load %arg1[%c0, %c0_0] : memref<16x128xf32, #tpu.memory_space<vmem>>, vector<16x128xf32>
    %cst = arith.constant dense<0.000000e+00> : vector<16xf32>
    %1 = vector.multi_reduction <add>, %0, %cst [1] : vector<16x128xf32> to vector<16xf32>
    %2 = vector.shape_cast %1 : vector<16xf32> to vector<16x1xf32>
    %cst_1 = arith.constant 1.280000e+02 : f32
    %3 = vector.broadcast %cst_1 : f32 to vector<16x1xf32>
    %4 = arith.divf %2, %3 : vector<16x1xf32>
    %5 = vector.broadcast %4 : vector<16x1xf32> to vector<16x128xf32>
    %6 = arith.subf %0, %5 : vector<16x128xf32>
    %7 = arith.mulf %6, %6 : vector<16x128xf32>
    %cst_2 = arith.constant dense<0.000000e+00> : vector<16xf32>
    %8 = vector.multi_reduction <add>, %7, %cst_2 [1] : vector<16x128xf32> to vector<16xf32>
    %9 = vector.shape_cast %8 : vector<16xf32> to vector<16x1xf32>
    %cst_3 = arith.constant 0.00787401571 : f32
    %10 = vector.broadcast %cst_3 : f32 to vector<16x1xf32>
    %11 = arith.mulf %9, %10 : vector<16x1xf32>
    %12 = math.sqrt %11 : vector<16x1xf32>
    %cst_4 = arith.constant 9.99999997E-7 : f32
    %13 = vector.broadcast %cst_4 : f32 to vector<16x1xf32>
    %14 = arith.addf %12, %13 : vector<16x1xf32>
    %15 = tpu.reciprocal %14 : vector<16x1xf32> -> vector<16x1xf32>
    %c0_5 = arith.constant 0 : index
    %c0_6 = arith.constant 0 : index
    %16 = vector.load %arg3[%c0_5, %c0_6] : memref<1x128xf32, #tpu.memory_space<vmem>>, vector<1x128xf32>
    %c0_7 = arith.constant 0 : index
    %c0_8 = arith.constant 0 : index
    %17 = vector.load %arg2[%c0_7, %c0_8] : memref<1x128xf32, #tpu.memory_space<vmem>>, vector<1x128xf32>
    %18 = vector.broadcast %15 : vector<16x1xf32> to vector<16x128xf32>
    %19 = arith.mulf %6, %18 : vector<16x128xf32>
    %20 = vector.broadcast %17 : vector<1x128xf32> to vector<16x128xf32>
    %21 = arith.mulf %20, %19 : vector<16x128xf32>
    %22 = vector.broadcast %16 : vector<1x128xf32> to vector<16x128xf32>
    %23 = arith.addf %22, %21 : vector<16x128xf32>
    %24 = arith.truncf %23 : vector<16x128xf32> to vector<16x128xbf16>
    %c0_9 = arith.constant 0 : index
    %c0_10 = arith.constant 0 : index
    %25 = vector.load %arg4[%c0_9, %c0_10] : memref<128x128xbf16, #tpu.memory_space<vmem>>, vector<128x128xbf16>
    %cst_11 = arith.constant dense<0.000000e+00> : vector<16x128xf32>
    %26 = tpu.matmul %24, %25, %cst_11 {dimension_numbers = #tpu.dot_dimension_numbers<[1], [0], [0], [1], [0, 0, 1, 1], [], []>} : vector<16x128xbf16>, vector<128x128xbf16>, vector<16x128xf32> -> vector<16x128xf32>
    %c0_12 = arith.constant 0 : index
    %c0_13 = arith.constant 0 : index
    %27 = vector.load %arg5[%c0_12, %c0_13] : memref<1x128xf32, #tpu.memory_space<vmem>>, vector<1x128xf32>
    %28 = vector.broadcast %27 : vector<1x128xf32> to vector<16x128xf32>
    %29 = arith.addf %26, %28 : vector<16x128xf32>
    %30 = arith.addf %0, %29 : vector<16x128xf32>
    %c0_14 = arith.constant 0 : index
    %c0_15 = arith.constant 0 : index
    %31 = vector.load %arg6[%c0_14, %c0_15] : memref<16x128xf32, #tpu.memory_space<vmem>>, vector<16x128xf32>
    tpu.vector_store %arg6[%c0_14, %c0_15], %30 {strides = array<i32>} : memref<16x128xf32, #tpu.memory_space<vmem>>, vector<16x128xf32>,
    return
  }
  func.func @transform_0(%arg0: i32) -> (i32, i32) {
    %c0_i32 = arith.constant 0 : i32
    %c0_i32_0 = arith.constant 0 : i32
    return %arg0, %c0_i32 : i32, i32
  }
  func.func @transform_1(%arg0: i32) -> (i32, i32) {
    %c0_i32 = arith.constant 0 : i32
    %c0_i32_0 = arith.constant 0 : i32
    %c0_i32_1 = arith.constant 0 : i32
    return %c0_i32, %c0_i32_0 : i32, i32
  }
  func.func @transform_2(%arg0: i32) -> (i32, i32) {
    %c0_i32 = arith.constant 0 : i32
    %c0_i32_0 = arith.constant 0 : i32
    %c0_i32_1 = arith.constant 0 : i32
    return %c0_i32, %c0_i32_0 : i32, i32
  }
  func.func @transform_3(%arg0: i32) -> (i32, i32) {
    %c0_i32 = arith.constant 0 : i32
    %c0_i32_0 = arith.constant 0 : i32
    %c0_i32_1 = arith.constant 0 : i32
    return %c0_i32, %c0_i32_0 : i32, i32
  }
  func.func @transform_4(%arg0: i32) -> (i32, i32) {
    %c0_i32 = arith.constant 0 : i32
    %c0_i32_0 = arith.constant 0 : i32
    %c0_i32_1 = arith.constant 0 : i32
    return %c0_i32, %c0_i32_0 : i32, i32
  }
  func.func @transform_5(%arg0: i32) -> (i32, i32) {
    %c0_i32 = arith.constant 0 : i32
    %c0_i32_0 = arith.constant 0 : i32
    return %arg0, %c0_i32 : i32, i32
  }
}

</mosaic_0001>

<llo_original>
// kernel: tpu_custom_call.1
$region0: #{tpu_custom_call.1}
  #allocation0 [shape = 'u32[]', space=smem, size = 0x4, offset = 0x4, fixed_abs, tag = 'smem constant byte address 0x4 - core index']
  #allocation1 [shape = 'u32[144,128]{1,0:T(1,128)}', space=vmem, size = 0x12000, scoped, tag = 'internal scratch']
  %s0 = inlined_call_operand.hbm [shape: f32[16,128], index: 0, kind: input, shape index: {}]
  %s1 = inlined_call_operand.vmem [shape: f32[1,128], index: 1, kind: input, shape index: {}]
  %s2 = inlined_call_operand.vmem [shape: f32[1,128], index: 2, kind: input, shape index: {}]
  %s3 = inlined_call_operand.hbm [shape: bf16[128,128], index: 3, kind: input, shape index: {}]
  %s4 = inlined_call_operand.vmem [shape: f32[1,128], index: 4, kind: input, shape index: {}]
  %s5 = inlined_call_operand.hbm [shape: f32[16,128], index: 5, kind: output, shape index: {}]
  %s6 = sld [smem:[#allocation0]]
  $region38: #{tpu_custom_call.1} parent=0
    _
  %s8 = ssub.s32 1, %s6
  %s9 = scalar_select 0, %s8, %s6
  $region1: #{tpu_custom_call.1} parent=0
    #allocation2 [shape = 'u8[8192]{0}', space=vmem, size = 0x2000, scoped, tag = 'input window, operand 0, single buffered']
    #allocation3 [shape = 's32[1]{0}', space=sflag, size = 0x4, scoped, tag = 'scoped memory for tpu_custom_call.1']
    #allocation4 [shape = 's32[1]{0}', space=sflag, size = 0x4, scoped, tag = 'scoped memory for tpu_custom_call.1']
    #allocation5 [shape = 'u8[32768]{0}', space=vmem, size = 0x8000, scoped, tag = 'input window, operand 3, single buffered']
    #allocation6 [shape = 's32[1]{0}', space=sflag, size = 0x4, scoped, tag = 'scoped memory for tpu_custom_call.1']
    #allocation7 [shape = 'u8[8192]{0}', space=vmem, size = 0x2000, scoped, tag = 'output window, operand 0, single buffered']
    %10 = vsyncpa [#allocation3], 0
    %11 = vsyncpa [#allocation6], 0
    %12 = vsyncpa [#allocation4], 0
    // Predicated region
    $region2: #{tpu_custom_call.1} parent=1 // pred_check
      _
    $region3: #{tpu_custom_call.1} parent=1 // pred_check_branch
      %14 = sbr.rel (0) target = $region5
    $region4: #{tpu_custom_call.1} parent=1 // pred_region
      %s16 = ssub.s32 256, 256
      %17 = vsyncadd [#allocation3], %s16
      %s18 = sshll.u32 [#allocation2], 4
      %s19 = int_to_ptr.vmem [resolvable:$true] %s18
      %24 = dma.hbm_to_vmem [thread:$0]  %s0, 256, %s19, [#allocation3], 128, 128, 8
    $region5: #{tpu_custom_call.1} parent=1 // pred_fallthru
      _
    // Predicated region
    $region6: #{tpu_custom_call.1} parent=1 // pred_check
      _
    $region7: #{tpu_custom_call.1} parent=1 // pred_check_branch
      %26 = sbr.rel (0) target = $region9
    $region8: #{tpu_custom_call.1} parent=1 // pred_region
      _
    $region9: #{tpu_custom_call.1} parent=1 // pred_fallthru
      _
    // Predicated region
    $region10: #{tpu_custom_call.1} parent=1 // pred_check
      _
    $region11: #{tpu_custom_call.1} parent=1 // pred_check_branch
      %28 = sbr.rel (0) target = $region13
    $region12: #{tpu_custom_call.1} parent=1 // pred_region
      _
    $region13: #{tpu_custom_call.1} parent=1 // pred_fallthru
      _
    // Predicated region
    $region14: #{tpu_custom_call.1} parent=1 // pred_check
      _
    $region15: #{tpu_custom_call.1} parent=1 // pred_check_branch
      %30 = sbr.rel (0) target = $region17
    $region16: #{tpu_custom_call.1} parent=1 // pred_region
      %s32 = ssub.s32 1024, 1024
      %33 = vsyncadd [#allocation6], %s32
      %s34 = sshll.u32 [#allocation5], 4
      %s35 = int_to_ptr.vmem [resolvable:$true] %s34
      %40 = dma.hbm_to_vmem [thread:$0]  %s3, 1024, %s35, [#allocation6], 64, 64, 4
    $region17: #{tpu_custom_call.1} parent=1 // pred_fallthru
      _
    // Predicated region
    $region18: #{tpu_custom_call.1} parent=1 // pred_check
      _
    $region19: #{tpu_custom_call.1} parent=1 // pred_check_branch
      %42 = sbr.rel (0) target = $region21
    $region20: #{tpu_custom_call.1} parent=1 // pred_region
      _
    $region21: #{tpu_custom_call.1} parent=1 // pred_fallthru
      _
    // Predicated region
    $region22: #{tpu_custom_call.1} parent=1 // pred_check
      _
    $region23: #{tpu_custom_call.1} parent=1 // pred_check_branch
      %44 = sbr.rel (0) target = $region25
    $region24: #{tpu_custom_call.1} parent=1 // pred_region
      %45 = dma.done [#allocation3], 256
    $region25: #{tpu_custom_call.1} parent=1 // pred_fallthru
      _
    // Predicated region
    $region26: #{tpu_custom_call.1} parent=1 // pred_check
      _
    $region27: #{tpu_custom_call.1} parent=1 // pred_check_branch
      %47 = sbr.rel (0) target = $region29
    $region28: #{tpu_custom_call.1} parent=1 // pred_region
      %48 = dma.done [#allocation6], 1024
    $region29: #{tpu_custom_call.1} parent=1 // pred_fallthru
      _
    %v50 = vld [vmem:[#allocation2] sm:$0xff]
    %v51 = vld [vmem:[#allocation2 + $0x8] sm:$0xff]
    %52 = vadd.xlane.f32.xlu0 %v50
    %v53 = vpop.xlane.xlu0 %52
    %54 = vadd.xlane.f32.xlu0 %v51
    %v55 = vpop.xlane.xlu0 %54
    %v56 = vrcp.pop 128.0
    %v57 = vmul.f32 %v53, %v56
    %v58 = vmul.f32 %v55, %v56
    %v59 = vsub.f32 %v50, %v57
    %v60 = vsub.f32 %v51, %v58
    %v61 = vmul.f32 %v59, %v59
    %v62 = vmul.f32 %v60, %v60
    %63 = vadd.xlane.f32.xlu0 %v61
    %v64 = vpop.xlane.xlu0 %63
    %65 = vadd.xlane.f32.xlu0 %v62
    %v66 = vpop.xlane.xlu0 %65
    %v67 = vmul.f32 %v64, 0.007874016
    %v68 = vmul.f32 %v66, 0.007874016
    %v69 = vrsqrt.pop %v67
    %v70 = vmul.f32 %v67, %v69
    %vm71 = vcmp.eq.f32.partialorder %v67, inf
    %v72 = vsel %vm71, %v67, %v70
    %vm73 = vcmp.eq.f32.partialorder %v67, 0.0
    %v74 = vand.u32 %v67, 2147483648
    %v75 = vsel %vm73, %v74, %v72
    %v76 = vrsqrt.pop %v68
    %v77 = vmul.f32 %v68, %v76
    %vm78 = vcmp.eq.f32.partialorder %v68, inf
    %v79 = vsel %vm78, %v68, %v77
    %vm80 = vcmp.eq.f32.partialorder %v68, 0.0
    %v81 = vand.u32 %v68, 2147483648
    %v82 = vsel %vm80, %v81, %v79
    %v83 = vadd.f32 %v75, 1e-06
    %v84 = vadd.f32 %v82, 1e-06
    %v85 = vrcp.pop %v83
    %v86 = vrcp.pop %v84
    %v87 = vld [vmem:[%s2] sm:$0x1]
    %v88 = vld [vmem:[%s1] sm:$0x1]
    %v89 = vmul.f32 %v59, %v85
    %v90 = vmul.f32 %v60, %v86
    %v92 = vlaneseq
    %v93 = vshrl.u32 %v92, 7
    %v94 = vsub.s32 0, %v93
    %v95 = vrot.slane %v88, %v94
    %v97 = vmul.f32 %v95, %v89
    %v98 = vmul.f32 %v95, %v90
    %v100 = vlaneseq
    %v101 = vshrl.u32 %v100, 7
    %v102 = vsub.s32 0, %v101
    %v103 = vrot.slane %v87, %v102
    %v105 = vadd.f32 %v103, %v97
    %v106 = vadd.f32 %v103, %v98
    %v107 = vpack.c.bf16 %v106, %v105
    %v108 = vld [vmem:[#allocation5] sm:$0xf]
    %v109 = vld [vmem:[#allocation5 + $0x4] sm:$0xf]
    %v110 = vld [vmem:[#allocation5 + $0x8] sm:$0xf]
    %v111 = vld [vmem:[#allocation5 + $0xc] sm:$0xf]
    %v112 = vld [vmem:[#allocation5 + $0x10] sm:$0xf]
    %v113 = vld [vmem:[#allocation5 + $0x14] sm:$0xf]
    %v114 = vld [vmem:[#allocation5 + $0x18] sm:$0xf]
    %v115 = vld [vmem:[#allocation5 + $0x1c] sm:$0xf]
    %v116 = vld [vmem:[#allocation5 + $0x20] sm:$0xf]
    %v117 = vld [vmem:[#allocation5 + $0x24] sm:$0xf]
    %v118 = vld [vmem:[#allocation5 + $0x28] sm:$0xf]
    %v119 = vld [vmem:[#allocation5 + $0x2c] sm:$0xf]
    %v120 = vld [vmem:[#allocation5 + $0x30] sm:$0xf]
    %v121 = vld [vmem:[#allocation5 + $0x34] sm:$0xf]
    %v122 = vld [vmem:[#allocation5 + $0x38] sm:$0xf]
    %v123 = vld [vmem:[#allocation5 + $0x3c] sm:$0xf]
    %v124 = vld [vmem:[%s4] sm:$0x1]
    %v126 = vlaneseq
    %v127 = vshrl.u32 %v126, 7
    %v128 = vsub.s32 0, %v127
    %v129 = vrot.slane %v124, %v128
    %v147 = vunpack.c.l.b16 %v108
    %v148 = vunpack.c.l.b16 %v109
    %v149 = vunpack.c.l.b16 %v110
    %v150 = vunpack.c.l.b16 %v111
    %v151 = vunpack.c.l.b16 %v112
    %v152 = vunpack.c.l.b16 %v113
    %v153 = vunpack.c.l.b16 %v114
    %v154 = vunpack.c.l.b16 %v115
    %v155 = vunpack.c.l.b16 %v116
    %v156 = vunpack.c.l.b16 %v117
    %v157 = vunpack.c.l.b16 %v118
    %v158 = vunpack.c.l.b16 %v119
    %v159 = vunpack.c.l.b16 %v120
    %v160 = vunpack.c.l.b16 %v121
    %v161 = vunpack.c.l.b16 %v122
    %v162 = vunpack.c.l.b16 %v123
    %v163 = vpack.c.b16 %v148, %v147
    %v164 = vpack.c.b16 %v150, %v149
    %v165 = vpack.c.b16 %v152, %v151
    %v166 = vpack.c.b16 %v154, %v153
    %v167 = vpack.c.b16 %v156, %v155
    %v168 = vpack.c.b16 %v158, %v157
    %v169 = vpack.c.b16 %v160, %v159
    %v170 = vpack.c.b16 %v162, %v161
    %179 = vmatprep.subr.bf16.mxu0 0
    %180 = vmatpush1.bf16.msra.mxu0 %v170
    %181 = vmatprep.subr.bf16.mxu0 0
    %182 = vmatpush1.bf16.msra.mxu0 %v169
    %183 = vmatprep.subr.bf16.mxu0 0
    %184 = vmatpush1.bf16.msra.mxu0 %v168
    %185 = vmatprep.subr.bf16.mxu0 0
    %186 = vmatpush1.bf16.msra.mxu0 %v167
    %187 = vmatprep.subr.bf16.mxu0 0
    %188 = vmatpush1.bf16.msra.mxu0 %v166
    %189 = vmatprep.subr.bf16.mxu0 0
    %190 = vmatpush1.bf16.msra.mxu0 %v165
    %191 = vmatprep.subr.bf16.mxu0 0
    %192 = vmatpush1.bf16.msra.mxu0 %v164
    %193 = vmatprep.subr.bf16.mxu0 0
    %194 = vmatpush1.bf16.msra.mxu0 %v163
    %195 = vmatprep.subr.bf16.mxu0 0
    %196 = vmatpush2.bf16.msra.mxu0 0
    %197 = vmatprep.subr.bf16.mxu0 0
    %198 = vmatpush2.bf16.msra.mxu0 0
    %199 = vmatprep.subr.bf16.mxu0 0
    %200 = vmatpush2.bf16.msra.mxu0 0
    %201 = vmatprep.subr.bf16.mxu0 0
    %202 = vmatpush2.bf16.msra.mxu0 0
    %203 = vmatprep.subr.bf16.mxu0 0
    %204 = vmatpush2.bf16.msra.mxu0 0
    %205 = vmatprep.subr.bf16.mxu0 0
    %206 = vmatpush2.bf16.msra.mxu0 0
    %207 = vmatprep.subr.bf16.mxu0 0
    %208 = vmatpush2.bf16.msra.mxu0 0
    %209 = vmatprep.subr.bf16.mxu0 0
    %210 = vmatpush2.bf16.msra.mxu0 0
    %211 = vmatprep.mubr.bf16.mxu0 0
    %212 = vmatmul.mubr.bf16.gmra.mxu0 %v107
    %v213 = vpop.f32.mrf.mxu0
    %v214 = vadd.f32 %v129, %v213
    %v215 = vpop.f32.mrf.mxu0
    %v216 = vpop.f32.mrf.mxu0
    %v217 = vadd.f32 %v129, %v216
    %v218 = vpop.f32.mrf.mxu0
    %219 = vdwg.mxu0
    %v220 = vadd.f32 %v50, %v214
    %v221 = vadd.f32 %v51, %v217
    %222 = vst [vmem:[#allocation7] sm:$0xff] %v220
    %223 = vst [vmem:[#allocation7 + $0x8] sm:$0xff] %v221
    // Predicated region
    $region30: #{tpu_custom_call.1} parent=1 // pred_check
      _
    $region31: #{tpu_custom_call.1} parent=1 // pred_check_branch
      %225 = sbr.rel (0) target = $region33
    $region32: #{tpu_custom_call.1} parent=1 // pred_region
      %s227 = ssub.s32 256, 256
      %228 = vsyncadd [#allocation4], %s227
      %s229 = sshll.u32 [#allocation7], 4
      %s230 = int_to_ptr.vmem [resolvable:$true] %s229
      %235 = dma.vmem_to_hbm [thread:$0]  %s230, 256, %s5, [#allocation4], 128, 128, 8
    $region33: #{tpu_custom_call.1} parent=1 // pred_fallthru
      _
    // Predicated region
    $region34: #{tpu_custom_call.1} parent=1 // pred_check
      _
    $region35: #{tpu_custom_call.1} parent=1 // pred_check_branch
      %237 = sbr.rel (0) target = $region37
    $region36: #{tpu_custom_call.1} parent=1 // pred_region
      %238 = dma.done [#allocation4], 256
    $region37: #{tpu_custom_call.1} parent=1 // pred_fallthru
      _
    %239 = vsyncpa [#allocation3], 1
    %240 = vsyncpa [#allocation6], 1
    %241 = vsyncpa [#allocation4], 1

// kernel: tpu_custom_call.1
$region0: #{tpu_custom_call.1}
  #allocation0 [shape = 'u32[]', space=smem, size = 0x4, offset = 0x4, fixed_abs, tag = 'smem constant byte address 0x4 - core index']
  #allocation1 [shape = 'u32[144,128]{1,0:T(1,128)}', space=vmem, size = 0x12000, scoped, tag = 'internal scratch']
  %s0 = inlined_call_operand.hbm [shape: f32[16,128], index: 0, kind: input, shape index: {}]
  %s1 = inlined_call_operand.vmem [shape: f32[1,128], index: 1, kind: input, shape index: {}]
  %s2 = inlined_call_operand.vmem [shape: f32[1,128], index: 2, kind: input, shape index: {}]
  %s3 = inlined_call_operand.hbm [shape: bf16[128,128], index: 3, kind: input, shape index: {}]
  %s4 = inlined_call_operand.vmem [shape: f32[1,128], index: 4, kind: input, shape index: {}]
  %s5 = inlined_call_operand.hbm [shape: f32[16,128], index: 5, kind: output, shape index: {}]
  %s6 = sld [smem:[#allocation0]]
  $region38: #{tpu_custom_call.1} parent=0
    _
  %s8 = ssub.s32 1, %s6
  %s9 = scalar_select 0, %s8, %s6
  $region1: #{tpu_custom_call.1} parent=0
    #allocation2 [shape = 'u8[8192]{0}', space=vmem, size = 0x2000, scoped, tag = 'input window, operand 0, single buffered']
    #allocation3 [shape = 's32[1]{0}', space=sflag, size = 0x4, scoped, tag = 'scoped memory for tpu_custom_call.1']
    #allocation4 [shape = 's32[1]{0}', space=sflag, size = 0x4, scoped, tag = 'scoped memory for tpu_custom_call.1']
    #allocation5 [shape = 'u8[32768]{0}', space=vmem, size = 0x8000, scoped, tag = 'input window, operand 3, single buffered']
    #allocation6 [shape = 's32[1]{0}', space=sflag, size = 0x4, scoped, tag = 'scoped memory for tpu_custom_call.1']
    #allocation7 [shape = 'u8[8192]{0}', space=vmem, size = 0x2000, scoped, tag = 'output window, operand 0, single buffered']
    %10 = vsyncpa [#allocation3], 0
    %11 = vsyncpa [#allocation6], 0
    %12 = vsyncpa [#allocation4], 0
    // Predicated region
    $region2: #{tpu_custom_call.1} parent=1 // pred_check
      _
    $region3: #{tpu_custom_call.1} parent=1 // pred_check_branch
      %14 = sbr.rel (0) target = $region5
    $region4: #{tpu_custom_call.1} parent=1 // pred_region
      %s16 = ssub.s32 256, 256
      %17 = vsyncadd [#allocation3], %s16
      %s18 = sshll.u32 [#allocation2], 4
      %s19 = int_to_ptr.vmem [resolvable:$true] %s18
      %24 = dma.hbm_to_vmem [thread:$0]  %s0, 256, %s19, [#allocation3], 128, 128, 8
    $region5: #{tpu_custom_call.1} parent=1 // pred_fallthru
      _
    // Predicated region
    $region6: #{tpu_custom_call.1} parent=1 // pred_check
      _
    $region7: #{tpu_custom_call.1} parent=1 // pred_check_branch
      %26 = sbr.rel (0) target = $region9
    $region8: #{tpu_custom_call.1} parent=1 // pred_region
      _
    $region9: #{tpu_custom_call.1} parent=1 // pred_fallthru
      _
    // Predicated region
    $region10: #{tpu_custom_call.1} parent=1 // pred_check
      _
    $region11: #{tpu_custom_call.1} parent=1 // pred_check_branch
      %28 = sbr.rel (0) target = $region13
    $region12: #{tpu_custom_call.1} parent=1 // pred_region
      _
    $region13: #{tpu_custom_call.1} parent=1 // pred_fallthru
      _
    // Predicated region
    $region14: #{tpu_custom_call.1} parent=1 // pred_check
      _
    $region15: #{tpu_custom_call.1} parent=1 // pred_check_branch
      %30 = sbr.rel (0) target = $region17
    $region16: #{tpu_custom_call.1} parent=1 // pred_region
      %s32 = ssub.s32 1024, 1024
      %33 = vsyncadd [#allocation6], %s32
      %s34 = sshll.u32 [#allocation5], 4
      %s35 = int_to_ptr.vmem [resolvable:$true] %s34
      %40 = dma.hbm_to_vmem [thread:$0]  %s3, 1024, %s35, [#allocation6], 64, 64, 4
    $region17: #{tpu_custom_call.1} parent=1 // pred_fallthru
      _
    // Predicated region
    $region18: #{tpu_custom_call.1} parent=1 // pred_check
      _
    $region19: #{tpu_custom_call.1} parent=1 // pred_check_branch
      %42 = sbr.rel (0) target = $region21
    $region20: #{tpu_custom_call.1} parent=1 // pred_region
      _
    $region21: #{tpu_custom_call.1} parent=1 // pred_fallthru
      _
    // Predicated region
    $region22: #{tpu_custom_call.1} parent=1 // pred_check
      _
    $region23: #{tpu_custom_call.1} parent=1 // pred_check_branch
      %44 = sbr.rel (0) target = $region25
    $region24: #{tpu_custom_call.1} parent=1 // pred_region
      %45 = dma.done [#allocation3], 256
    $region25: #{tpu_custom_call.1} parent=1 // pred_fallthru
      _
    // Predicated region
    $region26: #{tpu_custom_call.1} parent=1 // pred_check
      _
    $region27: #{tpu_custom_call.1} parent=1 // pred_check_branch
      %47 = sbr.rel (0) target = $region29
    $region28: #{tpu_custom_call.1} parent=1 // pred_region
      %48 = dma.done [#allocation6], 1024
    $region29: #{tpu_custom_call.1} parent=1 // pred_fallthru
      _
    %v50 = vld [vmem:[#allocation2] sm:$0xff]
    %v51 = vld [vmem:[#allocation2 + $0x8] sm:$0xff]
    %52 = vadd.xlane.f32.xlu0 %v50
    %v53 = vpop.xlane.xlu0 %52
    %54 = vadd.xlane.f32.xlu0 %v51
    %v55 = vpop.xlane.xlu0 %54
    %v56 = vrcp.pop 128.0
    %v57 = vmul.f32 %v53, %v56
    %v58 = vmul.f32 %v55, %v56
    %v59 = vsub.f32 %v50, %v57
    %v60 = vsub.f32 %v51, %v58
    %v61 = vmul.f32 %v59, %v59
    %v62 = vmul.f32 %v60, %v60
    %63 = vadd.xlane.f32.xlu0 %v61
    %v64 = vpop.xlane.xlu0 %63
    %65 = vadd.xlane.f32.xlu0 %v62
    %v66 = vpop.xlane.xlu0 %65
    %v67 = vmul.f32 %v64, 0.007874016
    %v68 = vmul.f32 %v66, 0.007874016
    %v69 = vrsqrt.pop %v67
    %v70 = vmul.f32 %v67, %v69
    %vm71 = vcmp.eq.f32.partialorder %v67, inf
    %v72 = vsel %vm71, %v67, %v70
    %vm73 = vcmp.eq.f32.partialorder %v67, 0.0
    %v74 = vand.u32 %v67, 2147483648
    %v75 = vsel %vm73, %v74, %v72
    %v76 = vrsqrt.pop %v68
    %v77 = vmul.f32 %v68, %v76
    %vm78 = vcmp.eq.f32.partialorder %v68, inf
    %v79 = vsel %vm78, %v68, %v77
    %vm80 = vcmp.eq.f32.partialorder %v68, 0.0
    %v81 = vand.u32 %v68, 2147483648
    %v82 = vsel %vm80, %v81, %v79
    %v83 = vadd.f32 %v75, 1e-06
    %v84 = vadd.f32 %v82, 1e-06
    %v85 = vrcp.pop %v83
    %v86 = vrcp.pop %v84
    %v87 = vld [vmem:[%s2] sm:$0x1]
    %v88 = vld [vmem:[%s1] sm:$0x1]
    %v89 = vmul.f32 %v59, %v85
    %v90 = vmul.f32 %v60, %v86
    %v92 = vlaneseq
    %v93 = vshrl.u32 %v92, 7
    %v94 = vsub.s32 0, %v93
    %v95 = vrot.slane %v88, %v94
    %v97 = vmul.f32 %v95, %v89
    %v98 = vmul.f32 %v95, %v90
    %v100 = vlaneseq
    %v101 = vshrl.u32 %v100, 7
    %v102 = vsub.s32 0, %v101
    %v103 = vrot.slane %v87, %v102
    %v105 = vadd.f32 %v103, %v97
    %v106 = vadd.f32 %v103, %v98
    %v107 = vpack.c.bf16 %v106, %v105
    %v108 = vld [vmem:[#allocation5] sm:$0xf]
    %v109 = vld [vmem:[#allocation5 + $0x4] sm:$0xf]
    %v110 = vld [vmem:[#allocation5 + $0x8] sm:$0xf]
    %v111 = vld [vmem:[#allocation5 + $0xc] sm:$0xf]
    %v112 = vld [vmem:[#allocation5 + $0x10] sm:$0xf]
    %v113 = vld [vmem:[#allocation5 + $0x14] sm:$0xf]
    %v114 = vld [vmem:[#allocation5 + $0x18] sm:$0xf]
    %v115 = vld [vmem:[#allocation5 + $0x1c] sm:$0xf]
    %v116 = vld [vmem:[#allocation5 + $0x20] sm:$0xf]
    %v117 = vld [vmem:[#allocation5 + $0x24] sm:$0xf]
    %v118 = vld [vmem:[#allocation5 + $0x28] sm:$0xf]
    %v119 = vld [vmem:[#allocation5 + $0x2c] sm:$0xf]
    %v120 = vld [vmem:[#allocation5 + $0x30] sm:$0xf]
    %v121 = vld [vmem:[#allocation5 + $0x34] sm:$0xf]
    %v122 = vld [vmem:[#allocation5 + $0x38] sm:$0xf]
    %v123 = vld [vmem:[#allocation5 + $0x3c] sm:$0xf]
    %v124 = vld [vmem:[%s4] sm:$0x1]
    %v126 = vlaneseq
    %v127 = vshrl.u32 %v126, 7
    %v128 = vsub.s32 0, %v127
    %v129 = vrot.slane %v124, %v128
    %v147 = vunpack.c.l.b16 %v108
    %v148 = vunpack.c.l.b16 %v109
    %v149 = vunpack.c.l.b16 %v110
    %v150 = vunpack.c.l.b16 %v111
    %v151 = vunpack.c.l.b16 %v112
    %v152 = vunpack.c.l.b16 %v113
    %v153 = vunpack.c.l.b16 %v114
    %v154 = vunpack.c.l.b16 %v115
    %v155 = vunpack.c.l.b16 %v116
    %v156 = vunpack.c.l.b16 %v117
    %v157 = vunpack.c.l.b16 %v118
    %v158 = vunpack.c.l.b16 %v119
    %v159 = vunpack.c.l.b16 %v120
    %v160 = vunpack.c.l.b16 %v121
    %v161 = vunpack.c.l.b16 %v122
    %v162 = vunpack.c.l.b16 %v123
    %v163 = vpack.c.b16 %v148, %v147
    %v164 = vpack.c.b16 %v150, %v149
    %v165 = vpack.c.b16 %v152, %v151
    %v166 = vpack.c.b16 %v154, %v153
    %v167 = vpack.c.b16 %v156, %v155
    %v168 = vpack.c.b16 %v158, %v157
    %v169 = vpack.c.b16 %v160, %v159
    %v170 = vpack.c.b16 %v162, %v161
    %179 = vmatprep.subr.bf16.mxu0 0
    %180 = vmatpush1.bf16.msra.mxu0 %v170
    %181 = vmatprep.subr.bf16.mxu0 0
    %182 = vmatpush1.bf16.msra.mxu0 %v169
    %183 = vmatprep.subr.bf16.mxu0 0
    %184 = vmatpush1.bf16.msra.mxu0 %v168
    %185 = vmatprep.subr.bf16.mxu0 0
    %186 = vmatpush1.bf16.msra.mxu0 %v167
    %187 = vmatprep.subr.bf16.mxu0 0
    %188 = vmatpush1.bf16.msra.mxu0 %v166
    %189 = vmatprep.subr.bf16.mxu0 0
    %190 = vmatpush1.bf16.msra.mxu0 %v165
    %191 = vmatprep.subr.bf16.mxu0 0
    %192 = vmatpush1.bf16.msra.mxu0 %v164
    %193 = vmatprep.subr.bf16.mxu0 0
    %194 = vmatpush1.bf16.msra.mxu0 %v163
    %195 = vmatprep.subr.bf16.mxu0 0
    %196 = vmatpush2.bf16.msra.mxu0 0
    %197 = vmatprep.subr.bf16.mxu0 0
    %198 = vmatpush2.bf16.msra.mxu0 0
    %199 = vmatprep.subr.bf16.mxu0 0
    %200 = vmatpush2.bf16.msra.mxu0 0
    %201 = vmatprep.subr.bf16.mxu0 0
    %202 = vmatpush2.bf16.msra.mxu0 0
    %203 = vmatprep.subr.bf16.mxu0 0
    %204 = vmatpush2.bf16.msra.mxu0 0
    %205 = vmatprep.subr.bf16.mxu0 0
    %206 = vmatpush2.bf16.msra.mxu0 0
    %207 = vmatprep.subr.bf16.mxu0 0
    %208 = vmatpush2.bf16.msra.mxu0 0
    %209 = vmatprep.subr.bf16.mxu0 0
    %210 = vmatpush2.bf16.msra.mxu0 0
    %211 = vmatprep.mubr.bf16.mxu0 0
    %212 = vmatmul.mubr.bf16.gmra.mxu0 %v107
    %v213 = vpop.f32.mrf.mxu0
    %v214 = vadd.f32 %v129, %v213
    %v215 = vpop.f32.mrf.mxu0
    %v216 = vpop.f32.mrf.mxu0
    %v217 = vadd.f32 %v129, %v216
    %v218 = vpop.f32.mrf.mxu0
    %219 = vdwg.mxu0
    %v220 = vadd.f32 %v50, %v214
    %v221 = vadd.f32 %v51, %v217
    %222 = vst [vmem:[#allocation7] sm:$0xff] %v220
    %223 = vst [vmem:[#allocation7 + $0x8] sm:$0xff] %v221
    // Predicated region
    $region30: #{tpu_custom_call.1} parent=1 // pred_check
      _
    $region31: #{tpu_custom_call.1} parent=1 // pred_check_branch
      %225 = sbr.rel (0) target = $region33
    $region32: #{tpu_custom_call.1} parent=1 // pred_region
      %s227 = ssub.s32 256, 256
      %228 = vsyncadd [#allocation4], %s227
      %s229 = sshll.u32 [#allocation7], 4
      %s230 = int_to_ptr.vmem [resolvable:$true] %s229
      %235 = dma.vmem_to_hbm [thread:$0]  %s230, 256, %s5, [#allocation4], 128, 128, 8
    $region33: #{tpu_custom_call.1} parent=1 // pred_fallthru
      _
    // Predicated region
    $region34: #{tpu_custom_call.1} parent=1 // pred_check
      _
    $region35: #{tpu_custom_call.1} parent=1 // pred_check_branch
      %237 = sbr.rel (0) target = $region37
    $region36: #{tpu_custom_call.1} parent=1 // pred_region
      %238 = dma.done [#allocation4], 256
    $region37: #{tpu_custom_call.1} parent=1 // pred_fallthru
      _
    %239 = vsyncpa [#allocation3], 1
    %240 = vsyncpa [#allocation6], 1
    %241 = vsyncpa [#allocation4], 1

</llo_original>
